<compile_context>
chip_gen: v5e
topology: v5e:2x2
jax: 0.10.0
libtpu: 0.0.40
codegen_flags: <defaults>
</compile_context>

<pallas_src>
import functools

import jax
import jax.numpy as jnp
from jax.experimental import pallas as pl
from jax.experimental.pallas import tpu as pltpu


# ----------------------------------------------------------------------------
# Shared per-tile compute.  q [TB,E] f32, k/v [TB,L,E] f32, lengths [TB,1] i32.
# Writes the TRANSPOSED result [E, TB] so the output store is lane-dense.
# ----------------------------------------------------------------------------
def _din_tile(q, k, v, lengths, wa, wb, wp, b, wf, out_ref):
    TB, L, E = k.shape
    H = wa.shape[1]

    # q-path: one tiny matmul per batch row, broadcast over L.  b12 is folded
    # in here (TB*H adds) instead of into the large [TB,L,H] tensor.
    qa = jnp.dot(q, wa, preferred_element_type=jnp.float32) + b          # [TB, H]

    # k-path and (q*k)-path as flat 2-D matmuls (leading dims merged, lane
    # axis untouched -> no relayout, no lane-axis concat).
    k2 = k.reshape(TB * L, E)
    qk2 = (q[:, None, :] * k).reshape(TB * L, E)
    h = (jnp.dot(k2, wb, preferred_element_type=jnp.float32) +
         jnp.dot(qk2, wp, preferred_element_type=jnp.float32))           # [TB*L, H]
    h = h.reshape(TB, L, H) + qa[:, None, :]
    h = jax.nn.sigmoid(h)                                                # EUP

    # Width-1 final linear == multiply + lane reduction (bias dropped: it is a
    # per-row constant pre-softmax shift).
    logits = jnp.sum(h * wf, axis=-1)                                    # [TB, L]

    # Padding mask rebuilt in-kernel from per-row lengths.  Large finite
    # negative keeps fully-masked rows NaN-free (uniform distribution).
    pos = jax.lax.broadcasted_iota(jnp.int32, (TB, L), 1)
    logits = jnp.where(pos >= lengths, jnp.float32(-1e30), logits)

    m = jnp.max(logits, axis=-1, keepdims=True)
    p = jnp.exp(logits - m)
    score = p / jnp.sum(p, axis=-1, keepdims=True)                       # [TB, L]

    # score^T @ v -> [TB, E]; stored transposed [E, TB] (lane-dense block).
    out = jnp.sum(score[:, :, None] * v, axis=1)
    out_ref[...] = out.T.astype(out_ref.dtype)


def _din_kernel_shared(q_ref, k_ref, len_ref, wa_ref, wb_ref, wp_ref, b_ref,
                       wf_ref, out_ref):
    # DIN case: v is the history embedding == k -> single HBM stream, the k
    # tile is reused for the score @ v reduction.
    k = k_ref[...].astype(jnp.float32)
    _din_tile(q_ref[...], k, k, len_ref[...], wa_ref[...], wb_ref[...],
              wp_ref[...], b_ref[...], wf_ref[...], out_ref)


def _din_kernel_split(q_ref, k_ref, v_ref, len_ref, wa_ref, wb_ref, wp_ref,
                      b_ref, wf_ref, out_ref):
    # Generic module signature: distinct v tensor.
    _din_tile(q_ref[...], k_ref[...].astype(jnp.float32),
              v_ref[...].astype(jnp.float32), len_ref[...], wa_ref[...],
              wb_ref[...], wp_ref[...], b_ref[...], wf_ref[...], out_ref)


# ----------------------------------------------------------------------------
# Wrapper: offline weight folding + batch-tiled pallas_call.
# Weights stored as [in, out] (transposed PyTorch nn.Linear), biases [1, out].
# `lengths[b]` = number of valid (non-padded) history positions of row b
# (the DIN padding mask is mask[b, l] = l >= lengths[b]).
# ----------------------------------------------------------------------------
@functools.partial(jax.jit,
                   static_argnames=("block_b", "stream_dtype",
                                    "vmem_limit_bytes"))
def din_attention(q, k, lengths, w1, b1, w2, b2, wf, bf, v=None, *,
                  block_b=512, stream_dtype=jnp.bfloat16,
                  vmem_limit_bytes=48 * 1024 * 1024):
    B, L, E = k.shape
    H2 = w2.shape[1]
    del bf  # pre-softmax per-row constant shift -> no-op under softmax.

    # Exact offline folding of the two (purely linear) dense layers.
    w12 = w1 @ w2                                # [4E, H2]
    b12 = b1 @ w2 + b2                           # [1, H2]
    # Split concat([q, k, q-k, q*k]) @ w12 into per-feature matmuls.
    wa = w12[:E] + w12[2 * E:3 * E]              # multiplies q
    wb = w12[E:2 * E] - w12[2 * E:3 * E]         # multiplies k
    wp = w12[3 * E:]                             # multiplies q * k
    wf_row = wf.reshape(1, H2)                   # final linear -> mul + reduce

    q2 = q.reshape(B, E).astype(jnp.float32)     # tiny: keep f32
    k_s = k.astype(stream_dtype)                 # dominant stream -> bf16
    len2 = lengths.reshape(B, 1).astype(jnp.int32)

    # Batch tile: full B when it fits, else a multiple of 128 (sublane-aligned
    # q/len blocks; lane-dense transposed output block).  For production, pick
    # block_b so TB*L*E*2 bytes lands around 2-8 MiB per buffer; roughly halve
    # it for v7x (64 MiB physical VMEM) vs v5e/v6e (128 MiB).
    if B <= block_b:
        tb = B
    else:
        tb = (block_b // 128) * 128
        assert tb >= 128, "block_b must be >= 128 when tiling the batch"
    assert E % 8 == 0, "embedding_dim must be a multiple of 8"

    grid = (pl.cdiv(B, tb),)
    batch2 = lambda i: (i, 0)
    batch3 = lambda i: (i, 0, 0)
    const2 = lambda i: (0, 0)

    in_specs = [
        pl.BlockSpec((tb, E), batch2),           # q
        pl.BlockSpec((tb, L, E), batch3),        # k (bf16 stream)
    ]
    args = [q2, k_s]
    if v is not None:
        in_specs.append(pl.BlockSpec((tb, L, E), batch3))   # v (bf16 stream)
        args.append(v.astype(stream_dtype))
        kernel = _din_kernel_split
    else:
        kernel = _din_kernel_shared               # DIN: v == k, no extra DMA
    in_specs += [
        pl.BlockSpec((tb, 1), batch2),           # lengths
        pl.BlockSpec((E, H2), const2),           # wa  (resident)
        pl.BlockSpec((E, H2), const2),           # wb  (resident)
        pl.BlockSpec((E, H2), const2),           # wp  (resident)
        pl.BlockSpec((1, H2), const2),           # b12 (resident)
        pl.BlockSpec((1, H2), const2),           # wf  (resident)
    ]
    args += [len2, wa, wb, wp, b12, wf_row]

    out_t = pl.pallas_call(
        kernel,
        out_shape=jax.ShapeDtypeStruct((E, B), jnp.float32),   # transposed
        grid=grid,
        in_specs=in_specs,
        out_specs=pl.BlockSpec((E, tb), lambda i: (0, i)),
        compiler_params=pltpu.CompilerParams(
            dimension_semantics=("parallel",),   # v7x: shard batch over 2 TCs
            vmem_limit_bytes=vmem_limit_bytes,
        ),
    )(*args)
    return out_t.T                               # [B, E]


# ----------------------------------------------------------------------------
# Pure-JAX reference mirroring the PyTorch forward (unfused weights, -inf
# mask) to verify the algebraic rewrites are exact.
# ----------------------------------------------------------------------------
def din_attention_ref(q, k, v, mask_bool, w1, b1, w2, b2, wf, bf):
    B, L, E = k.shape
    q_rep = jnp.broadcast_to(q, (B, L, E))
    info = jnp.concatenate([q_rep, k, q_rep - k, q_rep * k], axis=-1)
    h = info @ w1 + b1
    h = h @ w2 + b2
    h = jax.nn.sigmoid(h)
    logits = h @ wf + bf                          # [B, L, 1]
    logits = jnp.where(mask_bool[..., None], -jnp.inf, logits)
    score = jax.nn.softmax(logits, axis=1)        # softmax over L
    out = jnp.einsum('blo,ble->boe', score, v)    # score^T @ v -> [B, 1, E]
    return out[:, 0, :]


if __name__ == "__main__":
    # Shapes consistent with the module: embedding_dim E = 8 -> concat width
    # 4E = 32; att_hidden_units = [32, 16, 8]; final linear 8 -> 1.
    B, L, E = 16, 8, 8
    H1, H2 = 16, 8

    key = jax.random.PRNGKey(0)
    kq, kk, kv, kw1, kb1, kw2, kb2, kwf, kbf = jax.random.split(key, 9)

    q = jax.random.normal(kq, (B, 1, E), dtype=jnp.float32)
    k = jax.random.normal(kk, (B, L, E), dtype=jnp.float32)

    # Per-row valid history length (1..L, never fully masked) and the
    # equivalent boolean padding mask used by the reference.
    lengths = 1 + (jnp.arange(B, dtype=jnp.int32) % L)
    pos = jnp.arange(L, dtype=jnp.int32)[None, :]
    mask_bool = pos >= lengths[:, None]           # True = padded

    scale = 0.1
    w1 = scale * jax.random.normal(kw1, (4 * E, H1), dtype=jnp.float32)
    b1 = scale * jax.random.normal(kb1, (1, H1), dtype=jnp.float32)
    w2 = scale * jax.random.normal(kw2, (H1, H2), dtype=jnp.float32)
    b2 = scale * jax.random.normal(kb2, (1, H2), dtype=jnp.float32)
    wf = scale * jax.random.normal(kwf, (H2, 1), dtype=jnp.float32)
    bf = scale * jax.random.normal(kbf, (1, 1), dtype=jnp.float32)

    # Reference sees the same bf16-rounded k/v the kernel streams (the
    # comparison checks the kernel, not the streaming quantization).
    k_r = k.astype(jnp.bfloat16).astype(jnp.float32)

    # --- DIN path: v is the history embedding == k (single HBM stream) ------
    out = jax.block_until_ready(
        din_attention(q, k, lengths, w1, b1, w2, b2, wf, bf))
    ref = din_attention_ref(q, k_r, k_r, mask_bool, w1, b1, w2, b2, wf, bf)
    assert out.shape == (B, E), out.shape
    assert jnp.allclose(out, ref, atol=2e-4, rtol=2e-4), \
        float(jnp.max(jnp.abs(out - ref)))

    # --- generic module signature: distinct v tensor -------------------------
    v = jax.random.normal(kv, (B, L, E), dtype=jnp.float32)
    out2 = jax.block_until_ready(
        din_attention(q, k, lengths, w1, b1, w2, b2, wf, bf, v=v))
    v_r = v.astype(jnp.bfloat16).astype(jnp.float32)
    ref2 = din_attention_ref(q, k_r, v_r, mask_bool, w1, b1, w2, b2, wf, bf)
    assert jnp.allclose(out2, ref2, atol=2e-4, rtol=2e-4), \
        float(jnp.max(jnp.abs(out2 - ref2)))

    # --- tiled path: batch larger than one tile (grid > 1, 128-row tiles) ----
    B2 = 384
    kq2, kk2 = jax.random.split(jax.random.PRNGKey(1), 2)
    q_b = jax.random.normal(kq2, (B2, 1, E), dtype=jnp.float32)
    k_b = jax.random.normal(kk2, (B2, L, E), dtype=jnp.float32)
    lengths_b = 1 + (jnp.arange(B2, dtype=jnp.int32) % L)
    mask_b = jnp.arange(L, dtype=jnp.int32)[None, :] >= lengths_b[:, None]
    out3 = jax.block_until_ready(
        din_attention(q_b, k_b, lengths_b, w1, b1, w2, b2, wf, bf,
                      block_b=128))
    k_br = k_b.astype(jnp.bfloat16).astype(jnp.float32)
    ref3 = din_attention_ref(q_b, k_br, k_br, mask_b, w1, b1, w2, b2, wf, bf)
    assert jnp.allclose(out3, ref3, atol=2e-4, rtol=2e-4), \
        float(jnp.max(jnp.abs(out3 - ref3)))

    print("KERNEL_OK")
</pallas_src>

<mosaic_0001>
module attributes {stable_mosaic.version = 11 : i64} {
  func.func @_din_kernel_shared(%arg0: i32, %arg1: memref<16x8xf32, #tpu.memory_space<vmem>>, %arg2: memref<16x8x8xbf16, #tpu.memory_space<vmem>>, %arg3: memref<16x1xi32, #tpu.memory_space<vmem>>, %arg4: memref<8x8xf32, #tpu.memory_space<vmem>>, %arg5: memref<8x8xf32, #tpu.memory_space<vmem>>, %arg6: memref<8x8xf32, #tpu.memory_space<vmem>>, %arg7: memref<1x8xf32, #tpu.memory_space<vmem>>, %arg8: memref<1x8xf32, #tpu.memory_space<vmem>>, %arg9: memref<8x16xf32, #tpu.memory_space<vmem>>) attributes {dimension_semantics = [#tpu.dimension_semantics<parallel>], iteration_bounds = array<i64: 1>, scalar_prefetch = 0 : i64, scratch_operands = 0 : i64, tpu.core_type = #tpu.core_type<tc>, window_params = [{transform_indices = @transform_0, window_bounds = array<i64: 16, 8>}, {transform_indices = @transform_1, window_bounds = array<i64: 16, 8, 8>}, {transform_indices = @transform_2, window_bounds = array<i64: 16, 1>}, {pipeline_mode = #tpu.pipeline_mode<synchronous>, transform_indices = @transform_3, window_bounds = array<i64: 8, 8>}, {pipeline_mode = #tpu.pipeline_mode<synchronous>, transform_indices = @transform_4, window_bounds = array<i64: 8, 8>}, {pipeline_mode = #tpu.pipeline_mode<synchronous>, transform_indices = @transform_5, window_bounds = array<i64: 8, 8>}, {pipeline_mode = #tpu.pipeline_mode<synchronous>, transform_indices = @transform_6, window_bounds = array<i64: 1, 8>}, {pipeline_mode = #tpu.pipeline_mode<synchronous>, transform_indices = @transform_7, window_bounds = array<i64: 1, 8>}, {transform_indices = @transform_8, window_bounds = array<i64: 8, 16>}]} {
    %c0 = arith.constant 0 : index
    %c0_0 = arith.constant 0 : index
    %c0_1 = arith.constant 0 : index
    %0 = vector.load %arg2[%c0, %c0_0, %c0_1] : memref<16x8x8xbf16, #tpu.memory_space<vmem>>, vector<16x8x8xbf16>
    %1 = arith.extf %0 : vector<16x8x8xbf16> to vector<16x8x8xf32>
    %c0_2 = arith.constant 0 : index
    %c0_3 = arith.constant 0 : index
    %2 = vector.load %arg1[%c0_2, %c0_3] : memref<16x8xf32, #tpu.memory_space<vmem>>, vector<16x8xf32>
    %c0_4 = arith.constant 0 : index
    %c0_5 = arith.constant 0 : index
    %3 = vector.load %arg3[%c0_4, %c0_5] : memref<16x1xi32, #tpu.memory_space<vmem>>, vector<16x1xi32>
    %c0_6 = arith.constant 0 : index
    %c0_7 = arith.constant 0 : index
    %4 = vector.load %arg4[%c0_6, %c0_7] : memref<8x8xf32, #tpu.memory_space<vmem>>, vector<8x8xf32>
    %c0_8 = arith.constant 0 : index
    %c0_9 = arith.constant 0 : index
    %5 = vector.load %arg5[%c0_8, %c0_9] : memref<8x8xf32, #tpu.memory_space<vmem>>, vector<8x8xf32>
    %c0_10 = arith.constant 0 : index
    %c0_11 = arith.constant 0 : index
    %6 = vector.load %arg6[%c0_10, %c0_11] : memref<8x8xf32, #tpu.memory_space<vmem>>, vector<8x8xf32>
    %c0_12 = arith.constant 0 : index
    %c0_13 = arith.constant 0 : index
    %7 = vector.load %arg7[%c0_12, %c0_13] : memref<1x8xf32, #tpu.memory_space<vmem>>, vector<1x8xf32>
    %c0_14 = arith.constant 0 : index
    %c0_15 = arith.constant 0 : index
    %8 = vector.load %arg8[%c0_14, %c0_15] : memref<1x8xf32, #tpu.memory_space<vmem>>, vector<1x8xf32>
    %cst = arith.constant dense<0.000000e+00> : vector<16x8xf32>
    %9 = tpu.matmul %2, %4, %cst {dimension_numbers = #tpu.dot_dimension_numbers<[1], [0], [0], [1], [0, 0, 1, 1], [], []>} : vector<16x8xf32>, vector<8x8xf32>, vector<16x8xf32> -> vector<16x8xf32>
    %10 = vector.broadcast %7 : vector<1x8xf32> to vector<16x8xf32>
    %11 = arith.addf %9, %10 : vector<16x8xf32>
    %12 = vector.shape_cast %1 : vector<16x8x8xf32> to vector<128x8xf32>
    %13 = vector.shape_cast %2 : vector<16x8xf32> to vector<16x1x8xf32>
    %14 = vector.broadcast %13 : vector<16x1x8xf32> to vector<16x8x8xf32>
    %15 = arith.mulf %14, %1 : vector<16x8x8xf32>
    %16 = vector.shape_cast %15 : vector<16x8x8xf32> to vector<128x8xf32>
    %cst_16 = arith.constant dense<0.000000e+00> : vector<128x8xf32>
    %17 = tpu.matmul %12, %5, %cst_16 {dimension_numbers = #tpu.dot_dimension_numbers<[1], [0], [0], [1], [0, 0, 1, 1], [], []>} : vector<128x8xf32>, vector<8x8xf32>, vector<128x8xf32> -> vector<128x8xf32>
    %cst_17 = arith.constant dense<0.000000e+00> : vector<128x8xf32>
    %18 = tpu.matmul %16, %6, %cst_17 {dimension_numbers = #tpu.dot_dimension_numbers<[1], [0], [0], [1], [0, 0, 1, 1], [], []>} : vector<128x8xf32>, vector<8x8xf32>, vector<128x8xf32> -> vector<128x8xf32>
    %19 = arith.addf %17, %18 : vector<128x8xf32>
    %20 = vector.shape_cast %19 : vector<128x8xf32> to vector<16x8x8xf32>
    %21 = vector.shape_cast %11 : vector<16x8xf32> to vector<16x1x8xf32>
    %22 = vector.broadcast %21 : vector<16x1x8xf32> to vector<16x8x8xf32>
    %23 = arith.addf %20, %22 : vector<16x8x8xf32>
    %24 = arith.negf %23 : vector<16x8x8xf32>
    %25 = math.exp %24 : vector<16x8x8xf32>
    %cst_18 = arith.constant 1.000000e+00 : f32
    %26 = vector.broadcast %cst_18 : f32 to vector<16x8x8xf32>
    %27 = arith.addf %26, %25 : vector<16x8x8xf32>
    %28 = arith.divf %26, %27 : vector<16x8x8xf32>
    %29 = vector.shape_cast %8 : vector<1x8xf32> to vector<1x1x8xf32>
    %30 = vector.broadcast %29 : vector<1x1x8xf32> to vector<16x8x8xf32>
    %31 = arith.mulf %28, %30 : vector<16x8x8xf32>
    %cst_19 = arith.constant dense<0.000000e+00> : vector<16x8xf32>
    %32 = vector.multi_reduction <add>, %31, %cst_19 [2] : vector<16x8x8xf32> to vector<16x8xf32>
    %33 = tpu.iota {dimensions = array<i32: 1>} : vector<16x8xi32>
    %34 = vector.broadcast %3 : vector<16x1xi32> to vector<16x8xi32>
    %35 = arith.cmpi sge, %33, %34 : vector<16x8xi32>
    %cst_20 = arith.constant -1.000000e+30 : f32
    %36 = vector.broadcast %cst_20 : f32 to vector<16x8xf32>
    %37 = arith.select %35, %36, %32 : vector<16x8xi1>, vector<16x8xf32>
    %cst_21 = arith.constant dense<0xFF800000> : vector<16xf32>
    %38 = vector.multi_reduction <maximumf>, %37, %cst_21 [1] : vector<16x8xf32> to vector<16xf32>
    %39 = vector.shape_cast %38 : vector<16xf32> to vector<16x1xf32>
    %40 = vector.broadcast %39 : vector<16x1xf32> to vector<16x8xf32>
    %41 = arith.subf %37, %40 : vector<16x8xf32>
    %42 = math.exp %41 : vector<16x8xf32>
    %cst_22 = arith.constant dense<0.000000e+00> : vector<16xf32>
    %43 = vector.multi_reduction <add>, %42, %cst_22 [1] : vector<16x8xf32> to vector<16xf32>
    %44 = vector.shape_cast %43 : vector<16xf32> to vector<16x1xf32>
    %45 = vector.broadcast %44 : vector<16x1xf32> to vector<16x8xf32>
    %46 = arith.divf %42, %45 : vector<16x8xf32>
    %47 = vector.shape_cast %46 : vector<16x8xf32> to vector<16x8x1xf32>
    %48 = vector.broadcast %47 : vector<16x8x1xf32> to vector<16x8x8xf32>
    %49 = arith.mulf %48, %1 : vector<16x8x8xf32>
    %cst_23 = arith.constant dense<0.000000e+00> : vector<16x8xf32>
    %50 = vector.multi_reduction <add>, %49, %cst_23 [1] : vector<16x8x8xf32> to vector<16x8xf32>
    %51 = tpu.transpose %50, [1, 0] : vector<16x8xf32> -> vector<8x16xf32>
    %c0_24 = arith.constant 0 : index
    %c0_25 = arith.constant 0 : index
    %52 = vector.load %arg9[%c0_24, %c0_25] : memref<8x16xf32, #tpu.memory_space<vmem>>, vector<8x16xf32>
    tpu.vector_store %arg9[%c0_24, %c0_25], %51 {strides = array<i32>} : memref<8x16xf32, #tpu.memory_space<vmem>>, vector<8x16xf32>,
    return
  }
  func.func @transform_0(%arg0: i32) -> (i32, i32) {
    %c0_i32 = arith.constant 0 : i32
    %c0_i32_0 = arith.constant 0 : i32
    return %arg0, %c0_i32 : i32, i32
  }
  func.func @transform_1(%arg0: i32) -> (i32, i32, i32) {
    %c0_i32 = arith.constant 0 : i32
    %c0_i32_0 = arith.constant 0 : i32
    %c0_i32_1 = arith.constant 0 : i32
    return %arg0, %c0_i32, %c0_i32_0 : i32, i32, i32
  }
  func.func @transform_2(%arg0: i32) -> (i32, i32) {
    %c0_i32 = arith.constant 0 : i32
    %c0_i32_0 = arith.constant 0 : i32
    return %arg0, %c0_i32 : i32, i32
  }
  func.func @transform_3(%arg0: i32) -> (i32, i32) {
    %c0_i32 = arith.constant 0 : i32
    %c0_i32_0 = arith.constant 0 : i32
    %c0_i32_1 = arith.constant 0 : i32
    return %c0_i32, %c0_i32_0 : i32, i32
  }
  func.func @transform_4(%arg0: i32) -> (i32, i32) {
    %c0_i32 = arith.constant 0 : i32
    %c0_i32_0 = arith.constant 0 : i32
    %c0_i32_1 = arith.constant 0 : i32
    return %c0_i32, %c0_i32_0 : i32, i32
  }
  func.func @transform_5(%arg0: i32) -> (i32, i32) {
    %c0_i32 = arith.constant 0 : i32
    %c0_i32_0 = arith.constant 0 : i32
    %c0_i32_1 = arith.constant 0 : i32
    return %c0_i32, %c0_i32_0 : i32, i32
  }
  func.func @transform_6(%arg0: i32) -> (i32, i32) {
    %c0_i32 = arith.constant 0 : i32
    %c0_i32_0 = arith.constant 0 : i32
    %c0_i32_1 = arith.constant 0 : i32
    return %c0_i32, %c0_i32_0 : i32, i32
  }
  func.func @transform_7(%arg0: i32) -> (i32, i32) {
    %c0_i32 = arith.constant 0 : i32
    %c0_i32_0 = arith.constant 0 : i32
    %c0_i32_1 = arith.constant 0 : i32
    return %c0_i32, %c0_i32_0 : i32, i32
  }
  func.func @transform_8(%arg0: i32) -> (i32, i32) {
    %c0_i32 = arith.constant 0 : i32
    %c0_i32_0 = arith.constant 0 : i32
    return %c0_i32, %arg0 : i32, i32
  }
}

</mosaic_0001>

<llo_original>
// kernel: din_attention.1
$region0: #{din_attention.1}
  #allocation0 [shape = 'u32[]', space=smem, size = 0x4, offset = 0x4, fixed_abs, tag = 'smem constant byte address 0x4 - core index']
  #allocation1 [shape = 'u32[72,128]{1,0:T(1,128)}', space=vmem, size = 0x9000, scoped, tag = 'internal scratch']
  %s0 = inlined_call_operand.vmem [shape: f32[16,8], index: 0, kind: input, shape index: {}]
  %s1 = inlined_call_operand.vmem [shape: bf16[16,8,8], index: 1, kind: input, shape index: {}]
  %s2 = inlined_call_operand.vmem [shape: s32[16,1], index: 2, kind: input, shape index: {}]
  %s3 = inlined_call_operand.vmem [shape: f32[8,8], index: 3, kind: input, shape index: {}]
  %s4 = inlined_call_operand.vmem [shape: f32[8,8], index: 4, kind: input, shape index: {}]
  %s5 = inlined_call_operand.vmem [shape: f32[8,8], index: 5, kind: input, shape index: {}]
  %s6 = inlined_call_operand.vmem [shape: f32[1,8], index: 6, kind: input, shape index: {}]
  %s7 = inlined_call_operand.vmem [shape: f32[1,8], index: 7, kind: input, shape index: {}]
  %s8 = inlined_call_operand.hbm [shape: f32[8,16], index: 8, kind: output, shape index: {}]
  %s9 = sld [smem:[#allocation0]]
  $region42: #{din_attention.1} parent=0
    _
  %s11 = ssub.s32 1, %s9
  %s12 = scalar_select 0, %s11, %s9
  $region1: #{din_attention.1} parent=0
    #allocation2 [shape = 'u8[4096]{0}', space=vmem, size = 0x1000, scoped, tag = 'output window, operand 0, single buffered']
    #allocation3 [shape = 's32[1]{0}', space=sflag, size = 0x4, scoped, tag = 'scoped memory for din_attention.1']
    %13 = vsyncpa [#allocation3], 0
    // Predicated region
    $region2: #{din_attention.1} parent=1 // pred_check
      _
    $region3: #{din_attention.1} parent=1 // pred_check_branch
      %15 = sbr.rel (0) target = $region5
    $region4: #{din_attention.1} parent=1 // pred_region
      _
    $region5: #{din_attention.1} parent=1 // pred_fallthru
      _
    // Predicated region
    $region6: #{din_attention.1} parent=1 // pred_check
      _
    $region7: #{din_attention.1} parent=1 // pred_check_branch
      %17 = sbr.rel (0) target = $region9
    $region8: #{din_attention.1} parent=1 // pred_region
      _
    $region9: #{din_attention.1} parent=1 // pred_fallthru
      _
    // Predicated region
    $region10: #{din_attention.1} parent=1 // pred_check
      _
    $region11: #{din_attention.1} parent=1 // pred_check_branch
      %19 = sbr.rel (0) target = $region13
    $region12: #{din_attention.1} parent=1 // pred_region
      _
    $region13: #{din_attention.1} parent=1 // pred_fallthru
      _
    // Predicated region
    $region14: #{din_attention.1} parent=1 // pred_check
      _
    $region15: #{din_attention.1} parent=1 // pred_check_branch
      %21 = sbr.rel (0) target = $region17
    $region16: #{din_attention.1} parent=1 // pred_region
      _
    $region17: #{din_attention.1} parent=1 // pred_fallthru
      _
    // Predicated region
    $region18: #{din_attention.1} parent=1 // pred_check
      _
    $region19: #{din_attention.1} parent=1 // pred_check_branch
      %23 = sbr.rel (0) target = $region21
    $region20: #{din_attention.1} parent=1 // pred_region
      _
    $region21: #{din_attention.1} parent=1 // pred_fallthru
      _
    // Predicated region
    $region22: #{din_attention.1} parent=1 // pred_check
      _
    $region23: #{din_attention.1} parent=1 // pred_check_branch
      %25 = sbr.rel (0) target = $region25
    $region24: #{din_attention.1} parent=1 // pred_region
      _
    $region25: #{din_attention.1} parent=1 // pred_fallthru
      _
    // Predicated region
    $region26: #{din_attention.1} parent=1 // pred_check
      _
    $region27: #{din_attention.1} parent=1 // pred_check_branch
      %27 = sbr.rel (0) target = $region29
    $region28: #{din_attention.1} parent=1 // pred_region
      _
    $region29: #{din_attention.1} parent=1 // pred_fallthru
      _
    // Predicated region
    $region30: #{din_attention.1} parent=1 // pred_check
      _
    $region31: #{din_attention.1} parent=1 // pred_check_branch
      %29 = sbr.rel (0) target = $region33
    $region32: #{din_attention.1} parent=1 // pred_region
      _
    $region33: #{din_attention.1} parent=1 // pred_fallthru
      _
    %v30 = vld [vmem:[%s1] sm:$0xf]
    %v31 = vld [vmem:[%s1 + $0x4] sm:$0xf]
    %v32 = vld [vmem:[%s1 + $0x8] sm:$0xf]
    %v33 = vld [vmem:[%s1 + $0xc] sm:$0xf]
    %v34 = vld [vmem:[%s1 + $0x10] sm:$0xf]
    %v35 = vld [vmem:[%s1 + $0x14] sm:$0xf]
    %v36 = vld [vmem:[%s1 + $0x18] sm:$0xf]
    %v37 = vld [vmem:[%s1 + $0x1c] sm:$0xf]
    %v38 = vld [vmem:[%s1 + $0x20] sm:$0xf]
    %v39 = vld [vmem:[%s1 + $0x24] sm:$0xf]
    %v40 = vld [vmem:[%s1 + $0x28] sm:$0xf]
    %v41 = vld [vmem:[%s1 + $0x2c] sm:$0xf]
    %v42 = vld [vmem:[%s1 + $0x30] sm:$0xf]
    %v43 = vld [vmem:[%s1 + $0x34] sm:$0xf]
    %v44 = vld [vmem:[%s1 + $0x38] sm:$0xf]
    %v45 = vld [vmem:[%s1 + $0x3c] sm:$0xf]
    %v46 = vunpack.c.l.bf16 %v30
    %v47 = vunpack.c.l.bf16 %v31
    %v48 = vunpack.c.l.bf16 %v32
    %v49 = vunpack.c.l.bf16 %v33
    %v50 = vunpack.c.l.bf16 %v34
    %v51 = vunpack.c.l.bf16 %v35
    %v52 = vunpack.c.l.bf16 %v36
    %v53 = vunpack.c.l.bf16 %v37
    %v54 = vunpack.c.l.bf16 %v38
    %v55 = vunpack.c.l.bf16 %v39
    %v56 = vunpack.c.l.bf16 %v40
    %v57 = vunpack.c.l.bf16 %v41
    %v58 = vunpack.c.l.bf16 %v42
    %v59 = vunpack.c.l.bf16 %v43
    %v60 = vunpack.c.l.bf16 %v44
    %v61 = vunpack.c.l.bf16 %v45
    %v62 = vld [vmem:[%s0] sm:$0xff]
    %v63 = vld [vmem:[%s0 + $0x8] sm:$0xff]
    %v64 = vld [vmem:[%s2] sm:$0xff]
    %v65 = vld [vmem:[%s2 + $0x8] sm:$0xff]
    %v66 = vld [vmem:[%s3] sm:$0xff]
    %v67 = vld [vmem:[%s4] sm:$0xff]
    %v68 = vld [vmem:[%s5] sm:$0xff]
    %v69 = vld [vmem:[%s6] sm:$0x1]
    %v70 = vld [vmem:[%s7] sm:$0x1]
    %v72 = vperm.slane %v69, 0
    %vm74 = vcmask 64512
    %v76 = vsel %vm74, %v62, 0
    %v79 = vsel %vm74, %v63, 0
    %81 = vmatpush.msra.mxu0 0.0
    %82 = vmatpush.msra.mxu0 0.0
    %83 = vmatpush.msra.mxu0 0.0
    %84 = vmatpush.msra.mxu0 0.0
    %85 = vmatpush.msra.mxu0 0.0
    %86 = vmatpush.msra.mxu0 0.0
    %87 = vmatpush.msra.mxu0 0.0
    %88 = vmatpush.msra.mxu0 0.0
    %89 = vmatpush.msra.mxu0 0.0
    %90 = vmatpush.msra.mxu0 0.0
    %91 = vmatpush.msra.mxu0 0.0
    %92 = vmatpush.msra.mxu0 0.0
    %93 = vmatpush.msra.mxu0 0.0
    %94 = vmatpush.msra.mxu0 0.0
    %95 = vmatpush.msra.mxu0 0.0
    %96 = vmatpush.msra.mxu0 %v66
    %97 = vmatmul.f32.gmra.mxu0 %v76
    %v98 = vpop.f32.mrf.mxu0
    %v99 = vadd.f32 %v72, %v98
    %100 = vmatmul.f32.gmra.mxu0 %v79
    %v101 = vpop.f32.mrf.mxu0
    %v102 = vadd.f32 %v72, %v101
    %103 = vdwg.mxu0
    %v104 = vrot.slane %v62, 1
    %v105 = vrot.slane %v62, 2
    %v106 = vrot.slane %v62, 3
    %v107 = vrot.slane %v62, 4
    %v108 = vrot.slane %v62, 5
    %v109 = vrot.slane %v62, 6
    %v110 = vrot.slane %v62, 7
    %v111 = vrot.slane %v63, 1
    %v112 = vrot.slane %v63, 2
    %v113 = vrot.slane %v63, 3
    %v114 = vrot.slane %v63, 4
    %v115 = vrot.slane %v63, 5
    %v116 = vrot.slane %v63, 6
    %v117 = vrot.slane %v63, 7
    %v118 = vperm.slane %v62, 0
    %v119 = vperm.slane %v104, 0
    %v120 = vperm.slane %v105, 0
    %v121 = vperm.slane %v106, 0
    %v122 = vperm.slane %v107, 0
    %v123 = vperm.slane %v108, 0
    %v124 = vperm.slane %v109, 0
    %v125 = vperm.slane %v110, 0
    %v126 = vperm.slane %v63, 0
    %v127 = vperm.slane %v111, 0
    %v128 = vperm.slane %v112, 0
    %v129 = vperm.slane %v113, 0
    %v130 = vperm.slane %v114, 0
    %v131 = vperm.slane %v115, 0
    %v132 = vperm.slane %v116, 0
    %v133 = vperm.slane %v117, 0
    %v150 = vmul.f32 %v118, %v46
    %v151 = vmul.f32 %v119, %v47
    %v152 = vmul.f32 %v120, %v48
    %v153 = vmul.f32 %v121, %v49
    %v154 = vmul.f32 %v122, %v50
    %v155 = vmul.f32 %v123, %v51
    %v156 = vmul.f32 %v124, %v52
    %v157 = vmul.f32 %v125, %v53
    %v158 = vmul.f32 %v126, %v54
    %v159 = vmul.f32 %v127, %v55
    %v160 = vmul.f32 %v128, %v56
    %v161 = vmul.f32 %v129, %v57
    %v162 = vmul.f32 %v130, %v58
    %v163 = vmul.f32 %v131, %v59
    %v164 = vmul.f32 %v132, %v60
    %v165 = vmul.f32 %v133, %v61
    %v167 = vsel %vm74, %v150, 0
    %v170 = vsel %vm74, %v151, 0
    %v173 = vsel %vm74, %v152, 0
    %v176 = vsel %vm74, %v153, 0
    %v179 = vsel %vm74, %v154, 0
    %v182 = vsel %vm74, %v155, 0
    %v185 = vsel %vm74, %v156, 0
    %v188 = vsel %vm74, %v157, 0
    %v191 = vsel %vm74, %v158, 0
    %v194 = vsel %vm74, %v159, 0
    %v197 = vsel %vm74, %v160, 0
    %v200 = vsel %vm74, %v161, 0
    %v203 = vsel %vm74, %v162, 0
    %v206 = vsel %vm74, %v163, 0
    %v209 = vsel %vm74, %v164, 0
    %v212 = vsel %vm74, %v165, 0
    %214 = vmatpush.msra.mxu0 0.0
    %215 = vmatpush.msra.mxu0 0.0
    %216 = vmatpush.msra.mxu0 0.0
    %217 = vmatpush.msra.mxu0 0.0
    %218 = vmatpush.msra.mxu0 0.0
    %219 = vmatpush.msra.mxu0 0.0
    %220 = vmatpush.msra.mxu0 0.0
    %221 = vmatpush.msra.mxu0 0.0
    %222 = vmatpush.msra.mxu0 0.0
    %223 = vmatpush.msra.mxu0 0.0
    %224 = vmatpush.msra.mxu0 0.0
    %225 = vmatpush.msra.mxu0 0.0
    %226 = vmatpush.msra.mxu0 0.0
    %227 = vmatpush.msra.mxu0 0.0
    %228 = vmatpush.msra.mxu0 0.0
    %229 = vmatpush.msra.mxu0 %v68
    %230 = vmatmul.f32.gmra.mxu0 %v167
    %v231 = vpop.f32.mrf.mxu0
    %v232 = vadd.f32 0.0, %v231
    %233 = vmatmul.f32.gmra.mxu0 %v170
    %v234 = vpop.f32.mrf.mxu0
    %v235 = vadd.f32 0.0, %v234
    %236 = vmatmul.f32.gmra.mxu0 %v173
    %v237 = vpop.f32.mrf.mxu0
    %v238 = vadd.f32 0.0, %v237
    %239 = vmatmul.f32.gmra.mxu0 %v176
    %v240 = vpop.f32.mrf.mxu0
    %v241 = vadd.f32 0.0, %v240
    %242 = vmatmul.f32.gmra.mxu0 %v179
    %v243 = vpop.f32.mrf.mxu0
    %v244 = vadd.f32 0.0, %v243
    %245 = vmatmul.f32.gmra.mxu0 %v182
    %v246 = vpop.f32.mrf.mxu0
    %v247 = vadd.f32 0.0, %v246
    %248 = vmatmul.f32.gmra.mxu0 %v185
    %v249 = vpop.f32.mrf.mxu0
    %v250 = vadd.f32 0.0, %v249
    %251 = vmatmul.f32.gmra.mxu0 %v188
    %v252 = vpop.f32.mrf.mxu0
    %v253 = vadd.f32 0.0, %v252
    %254 = vmatmul.f32.gmra.mxu0 %v191
    %v255 = vpop.f32.mrf.mxu0
    %v256 = vadd.f32 0.0, %v255
    %257 = vmatmul.f32.gmra.mxu0 %v194
    %v258 = vpop.f32.mrf.mxu0
    %v259 = vadd.f32 0.0, %v258
    %260 = vmatmul.f32.gmra.mxu0 %v197
    %v261 = vpop.f32.mrf.mxu0
    %v262 = vadd.f32 0.0, %v261
    %263 = vmatmul.f32.gmra.mxu0 %v200
    %v264 = vpop.f32.mrf.mxu0
    %v265 = vadd.f32 0.0, %v264
    %266 = vmatmul.f32.gmra.mxu0 %v203
    %v267 = vpop.f32.mrf.mxu0
    %v268 = vadd.f32 0.0, %v267
    %269 = vmatmul.f32.gmra.mxu0 %v206
    %v270 = vpop.f32.mrf.mxu0
    %v271 = vadd.f32 0.0, %v270
    %272 = vmatmul.f32.gmra.mxu0 %v209
    %v273 = vpop.f32.mrf.mxu0
    %v274 = vadd.f32 0.0, %v273
    %275 = vmatmul.f32.gmra.mxu0 %v212
    %v276 = vpop.f32.mrf.mxu0
    %v277 = vadd.f32 0.0, %v276
    %278 = vdwg.mxu0
    %v280 = vsel %vm74, %v46, 0
    %v283 = vsel %vm74, %v47, 0
    %v286 = vsel %vm74, %v48, 0
    %v289 = vsel %vm74, %v49, 0
    %v292 = vsel %vm74, %v50, 0
    %v295 = vsel %vm74, %v51, 0
    %v298 = vsel %vm74, %v52, 0
    %v301 = vsel %vm74, %v53, 0
    %v304 = vsel %vm74, %v54, 0
    %v307 = vsel %vm74, %v55, 0
    %v310 = vsel %vm74, %v56, 0
    %v313 = vsel %vm74, %v57, 0
    %v316 = vsel %vm74, %v58, 0
    %v319 = vsel %vm74, %v59, 0
    %v322 = vsel %vm74, %v60, 0
    %v325 = vsel %vm74, %v61, 0
    %327 = vmatpush.msra.mxu0 0.0
    %328 = vmatpush.msra.mxu0 0.0
    %329 = vmatpush.msra.mxu0 0.0
    %330 = vmatpush.msra.mxu0 0.0
    %331 = vmatpush.msra.mxu0 0.0
    %332 = vmatpush.msra.mxu0 0.0
    %333 = vmatpush.msra.mxu0 0.0
    %334 = vmatpush.msra.mxu0 0.0
    %335 = vmatpush.msra.mxu0 0.0
    %336 = vmatpush.msra.mxu0 0.0
    %337 = vmatpush.msra.mxu0 0.0
    %338 = vmatpush.msra.mxu0 0.0
    %339 = vmatpush.msra.mxu0 0.0
    %340 = vmatpush.msra.mxu0 0.0
    %341 = vmatpush.msra.mxu0 0.0
    %342 = vmatpush.msra.mxu0 %v67
    %343 = vmatmul.f32.gmra.mxu0 %v280
    %v344 = vpop.f32.mrf.mxu0
    %v345 = vadd.f32 %v232, %v344
    %346 = vmatmul.f32.gmra.mxu0 %v283
    %v347 = vpop.f32.mrf.mxu0
    %v348 = vadd.f32 %v235, %v347
    %349 = vmatmul.f32.gmra.mxu0 %v286
    %v350 = vpop.f32.mrf.mxu0
    %v351 = vadd.f32 %v238, %v350
    %352 = vmatmul.f32.gmra.mxu0 %v289
    %v353 = vpop.f32.mrf.mxu0
    %v354 = vadd.f32 %v241, %v353
    %355 = vmatmul.f32.gmra.mxu0 %v292
    %v356 = vpop.f32.mrf.mxu0
    %v357 = vadd.f32 %v244, %v356
    %358 = vmatmul.f32.gmra.mxu0 %v295
    %v359 = vpop.f32.mrf.mxu0
    %v360 = vadd.f32 %v247, %v359
    %361 = vmatmul.f32.gmra.mxu0 %v298
    %v362 = vpop.f32.mrf.mxu0
    %v363 = vadd.f32 %v250, %v362
    %364 = vmatmul.f32.gmra.mxu0 %v301
    %v365 = vpop.f32.mrf.mxu0
    %v366 = vadd.f32 %v253, %v365
    %367 = vmatmul.f32.gmra.mxu0 %v304
    %v368 = vpop.f32.mrf.mxu0
    %v369 = vadd.f32 %v256, %v368
    %370 = vmatmul.f32.gmra.mxu0 %v307
    %v371 = vpop.f32.mrf.mxu0
    %v372 = vadd.f32 %v259, %v371
    %373 = vmatmul.f32.gmra.mxu0 %v310
    %v374 = vpop.f32.mrf.mxu0
    %v375 = vadd.f32 %v262, %v374
    %376 = vmatmul.f32.gmra.mxu0 %v313
    %v377 = vpop.f32.mrf.mxu0
    %v378 = vadd.f32 %v265, %v377
    %379 = vmatmul.f32.gmra.mxu0 %v316
    %v380 = vpop.f32.mrf.mxu0
    %v381 = vadd.f32 %v268, %v380
    %382 = vmatmul.f32.gmra.mxu0 %v319
    %v383 = vpop.f32.mrf.mxu0
    %v384 = vadd.f32 %v271, %v383
    %385 = vmatmul.f32.gmra.mxu0 %v322
    %v386 = vpop.f32.mrf.mxu0
    %v387 = vadd.f32 %v274, %v386
    %388 = vmatmul.f32.gmra.mxu0 %v325
    %v389 = vpop.f32.mrf.mxu0
    %v390 = vadd.f32 %v277, %v389
    %391 = vdwg.mxu0
    %v394 = vrot.slane %v99, 1
    %v395 = vrot.slane %v99, 2
    %v396 = vrot.slane %v99, 3
    %v397 = vrot.slane %v99, 4
    %v398 = vrot.slane %v99, 5
    %v399 = vrot.slane %v99, 6
    %v400 = vrot.slane %v99, 7
    %v401 = vrot.slane %v102, 1
    %v402 = vrot.slane %v102, 2
    %v403 = vrot.slane %v102, 3
    %v404 = vrot.slane %v102, 4
    %v405 = vrot.slane %v102, 5
    %v406 = vrot.slane %v102, 6
    %v407 = vrot.slane %v102, 7
    %v408 = vperm.slane %v99, 0
    %v409 = vperm.slane %v394, 0
    %v410 = vperm.slane %v395, 0
    %v411 = vperm.slane %v396, 0
    %v412 = vperm.slane %v397, 0
    %v413 = vperm.slane %v398, 0
    %v414 = vperm.slane %v399, 0
    %v415 = vperm.slane %v400, 0
    %v416 = vperm.slane %v102, 0
    %v417 = vperm.slane %v401, 0
    %v418 = vperm.slane %v402, 0
    %v419 = vperm.slane %v403, 0
    %v420 = vperm.slane %v404, 0
    %v421 = vperm.slane %v405, 0
    %v422 = vperm.slane %v406, 0
    %v423 = vperm.slane %v407, 0
    %v440 = vadd.f32 %v345, %v408
    %v441 = vadd.f32 %v348, %v409
    %v442 = vadd.f32 %v351, %v410
    %v443 = vadd.f32 %v354, %v411
    %v444 = vadd.f32 %v357, %v412
    %v445 = vadd.f32 %v360, %v413
    %v446 = vadd.f32 %v363, %v414
    %v447 = vadd.f32 %v366, %v415
    %v448 = vadd.f32 %v369, %v416
    %v449 = vadd.f32 %v372, %v417
    %v450 = vadd.f32 %v375, %v418
    %v451 = vadd.f32 %v378, %v419
    %v452 = vadd.f32 %v381, %v420
    %v453 = vadd.f32 %v384, %v421
    %v454 = vadd.f32 %v387, %v422
    %v455 = vadd.f32 %v390, %v423
    %v456 = vxor.u32 %v440, 2147483648
    %v457 = vxor.u32 %v441, 2147483648
    %v458 = vxor.u32 %v442, 2147483648
    %v459 = vxor.u32 %v443, 2147483648
    %v460 = vxor.u32 %v444, 2147483648
    %v461 = vxor.u32 %v445, 2147483648
    %v462 = vxor.u32 %v446, 2147483648
    %v463 = vxor.u32 %v447, 2147483648
    %v464 = vxor.u32 %v448, 2147483648
    %v465 = vxor.u32 %v449, 2147483648
    %v466 = vxor.u32 %v450, 2147483648
    %v467 = vxor.u32 %v451, 2147483648
    %v468 = vxor.u32 %v452, 2147483648
    %v469 = vxor.u32 %v453, 2147483648
    %v470 = vxor.u32 %v454, 2147483648
    %v471 = vxor.u32 %v455, 2147483648
    %v472 = vmul.f32 %v456, 1.442695
    %v473 = vpow.pop %v472
    %v474 = vmul.f32 %v457, 1.442695
    %v475 = vpow.pop %v474
    %v476 = vmul.f32 %v458, 1.442695
    %v477 = vpow.pop %v476
    %v478 = vmul.f32 %v459, 1.442695
    %v479 = vpow.pop %v478
    %v480 = vmul.f32 %v460, 1.442695
    %v481 = vpow.pop %v480
    %v482 = vmul.f32 %v461, 1.442695
    %v483 = vpow.pop %v482
    %v484 = vmul.f32 %v462, 1.442695
    %v485 = vpow.pop %v484
    %v486 = vmul.f32 %v463, 1.442695
    %v487 = vpow.pop %v486
    %v488 = vmul.f32 %v464, 1.442695
    %v489 = vpow.pop %v488
    %v490 = vmul.f32 %v465, 1.442695
    %v491 = vpow.pop %v490
    %v492 = vmul.f32 %v466, 1.442695
    %v493 = vpow.pop %v492
    %v494 = vmul.f32 %v467, 1.442695
    %v495 = vpow.pop %v494
    %v496 = vmul.f32 %v468, 1.442695
    %v497 = vpow.pop %v496
    %v498 = vmul.f32 %v469, 1.442695
    %v499 = vpow.pop %v498
    %v500 = vmul.f32 %v470, 1.442695
    %v501 = vpow.pop %v500
    %v502 = vmul.f32 %v471, 1.442695
    %v503 = vpow.pop %v502
    %v504 = vadd.f32 %v473, 1.0
    %v505 = vadd.f32 %v475, 1.0
    %v506 = vadd.f32 %v477, 1.0
    %v507 = vadd.f32 %v479, 1.0
    %v508 = vadd.f32 %v481, 1.0
    %v509 = vadd.f32 %v483, 1.0
    %v510 = vadd.f32 %v485, 1.0
    %v511 = vadd.f32 %v487, 1.0
    %v512 = vadd.f32 %v489, 1.0
    %v513 = vadd.f32 %v491, 1.0
    %v514 = vadd.f32 %v493, 1.0
    %v515 = vadd.f32 %v495, 1.0
    %v516 = vadd.f32 %v497, 1.0
    %v517 = vadd.f32 %v499, 1.0
    %v518 = vadd.f32 %v501, 1.0
    %v519 = vadd.f32 %v503, 1.0
    %v520 = vrcp.pop %v504
    %v521 = vmul.f32 %v504, %v520
    %v522 = vsub.f32 1.0, %v521
    %v523 = vmul.f32 %v520, %v522
    %v524 = vadd.f32 %v520, %v523
    %vm525 = vweird.f32 %v504
    %vm526 = vweird.f32 %v520
    %vm527 = vmor %vm525, %vm526
    %v528 = vsel %vm527, %v520, %v524
    %v529 = vand.u32 2147483647, %v504
    %vm530 = vcmp.eq.f32.partialorder %v529, 8.507059e+37
    %v531 = vand.u32 %v504, 2147483648
    %v532 = vor.u32 1.1754944e-38, %v531
    %v533 = vsel %vm530, %v532, %v528
    %v534 = vmul.f32 1.0, %v533
    %v535 = vrcp.pop %v505
    %v536 = vmul.f32 %v505, %v535
    %v537 = vsub.f32 1.0, %v536
    %v538 = vmul.f32 %v535, %v537
    %v539 = vadd.f32 %v535, %v538
    %vm540 = vweird.f32 %v505
    %vm541 = vweird.f32 %v535
    %vm542 = vmor %vm540, %vm541
    %v543 = vsel %vm542, %v535, %v539
    %v544 = vand.u32 2147483647, %v505
    %vm545 = vcmp.eq.f32.partialorder %v544, 8.507059e+37
    %v546 = vand.u32 %v505, 2147483648
    %v547 = vor.u32 1.1754944e-38, %v546
    %v548 = vsel %vm545, %v547, %v543
    %v549 = vmul.f32 1.0, %v548
    %v550 = vrcp.pop %v506
    %v551 = vmul.f32 %v506, %v550
    %v552 = vsub.f32 1.0, %v551
    %v553 = vmul.f32 %v550, %v552
    %v554 = vadd.f32 %v550, %v553
    %vm555 = vweird.f32 %v506
    %vm556 = vweird.f32 %v550
    %vm557 = vmor %vm555, %vm556
    %v558 = vsel %vm557, %v550, %v554
    %v559 = vand.u32 2147483647, %v506
    %vm560 = vcmp.eq.f32.partialorder %v559, 8.507059e+37
    %v561 = vand.u32 %v506, 2147483648
    %v562 = vor.u32 1.1754944e-38, %v561
    %v563 = vsel %vm560, %v562, %v558
    %v564 = vmul.f32 1.0, %v563
    %v565 = vrcp.pop %v507
    %v566 = vmul.f32 %v507, %v565
    %v567 = vsub.f32 1.0, %v566
    %v568 = vmul.f32 %v565, %v567
    %v569 = vadd.f32 %v565, %v568
    %vm570 = vweird.f32 %v507
    %vm571 = vweird.f32 %v565
    %vm572 = vmor %vm570, %vm571
    %v573 = vsel %vm572, %v565, %v569
    %v574 = vand.u32 2147483647, %v507
    %vm575 = vcmp.eq.f32.partialorder %v574, 8.507059e+37
    %v576 = vand.u32 %v507, 2147483648
    %v577 = vor.u32 1.1754944e-38, %v576
    %v578 = vsel %vm575, %v577, %v573
    %v579 = vmul.f32 1.0, %v578
    %v580 = vrcp.pop %v508
    %v581 = vmul.f32 %v508, %v580
    %v582 = vsub.f32 1.0, %v581
    %v583 = vmul.f32 %v580, %v582
    %v584 = vadd.f32 %v580, %v583
    %vm585 = vweird.f32 %v508
    %vm586 = vweird.f32 %v580
    %vm587 = vmor %vm585, %vm586
    %v588 = vsel %vm587, %v580, %v584
    %v589 = vand.u32 2147483647, %v508
    %vm590 = vcmp.eq.f32.partialorder %v589, 8.507059e+37
    %v591 = vand.u32 %v508, 2147483648
    %v592 = vor.u32 1.1754944e-38, %v591
    %v593 = vsel %vm590, %v592, %v588
    %v594 = vmul.f32 1.0, %v593
    %v595 = vrcp.pop %v509
    %v596 = vmul.f32 %v509, %v595
    %v597 = vsub.f32 1.0, %v596
    %v598 = vmul.f32 %v595, %v597
    %v599 = vadd.f32 %v595, %v598
    %vm600 = vweird.f32 %v509
    %vm601 = vweird.f32 %v595
    %vm602 = vmor %vm600, %vm601
    %v603 = vsel %vm602, %v595, %v599
    %v604 = vand.u32 2147483647, %v509
    %vm605 = vcmp.eq.f32.partialorder %v604, 8.507059e+37
    %v606 = vand.u32 %v509, 2147483648
    %v607 = vor.u32 1.1754944e-38, %v606
    %v608 = vsel %vm605, %v607, %v603
    %v609 = vmul.f32 1.0, %v608
    %v610 = vrcp.pop %v510
    %v611 = vmul.f32 %v510, %v610
    %v612 = vsub.f32 1.0, %v611
    %v613 = vmul.f32 %v610, %v612
    %v614 = vadd.f32 %v610, %v613
    %vm615 = vweird.f32 %v510
    %vm616 = vweird.f32 %v610
    %vm617 = vmor %vm615, %vm616
    %v618 = vsel %vm617, %v610, %v614
    %v619 = vand.u32 2147483647, %v510
    %vm620 = vcmp.eq.f32.partialorder %v619, 8.507059e+37
    %v621 = vand.u32 %v510, 2147483648
    %v622 = vor.u32 1.1754944e-38, %v621
    %v623 = vsel %vm620, %v622, %v618
    %v624 = vmul.f32 1.0, %v623
    %v625 = vrcp.pop %v511
    %v626 = vmul.f32 %v511, %v625
    %v627 = vsub.f32 1.0, %v626
    %v628 = vmul.f32 %v625, %v627
    %v629 = vadd.f32 %v625, %v628
    %vm630 = vweird.f32 %v511
    %vm631 = vweird.f32 %v625
    %vm632 = vmor %vm630, %vm631
    %v633 = vsel %vm632, %v625, %v629
    %v634 = vand.u32 2147483647, %v511
    %vm635 = vcmp.eq.f32.partialorder %v634, 8.507059e+37
    %v636 = vand.u32 %v511, 2147483648
    %v637 = vor.u32 1.1754944e-38, %v636
    %v638 = vsel %vm635, %v637, %v633
    %v639 = vmul.f32 1.0, %v638
    %v640 = vrcp.pop %v512
    %v641 = vmul.f32 %v512, %v640
    %v642 = vsub.f32 1.0, %v641
    %v643 = vmul.f32 %v640, %v642
    %v644 = vadd.f32 %v640, %v643
    %vm645 = vweird.f32 %v512
    %vm646 = vweird.f32 %v640
    %vm647 = vmor %vm645, %vm646
    %v648 = vsel %vm647, %v640, %v644
    %v649 = vand.u32 2147483647, %v512
    %vm650 = vcmp.eq.f32.partialorder %v649, 8.507059e+37
    %v651 = vand.u32 %v512, 2147483648
    %v652 = vor.u32 1.1754944e-38, %v651
    %v653 = vsel %vm650, %v652, %v648
    %v654 = vmul.f32 1.0, %v653
    %v655 = vrcp.pop %v513
    %v656 = vmul.f32 %v513, %v655
    %v657 = vsub.f32 1.0, %v656
    %v658 = vmul.f32 %v655, %v657
    %v659 = vadd.f32 %v655, %v658
    %vm660 = vweird.f32 %v513
    %vm661 = vweird.f32 %v655
    %vm662 = vmor %vm660, %vm661
    %v663 = vsel %vm662, %v655, %v659
    %v664 = vand.u32 2147483647, %v513
    %vm665 = vcmp.eq.f32.partialorder %v664, 8.507059e+37
    %v666 = vand.u32 %v513, 2147483648
    %v667 = vor.u32 1.1754944e-38, %v666
    %v668 = vsel %vm665, %v667, %v663
    %v669 = vmul.f32 1.0, %v668
    %v670 = vrcp.pop %v514
    %v671 = vmul.f32 %v514, %v670
    %v672 = vsub.f32 1.0, %v671
    %v673 = vmul.f32 %v670, %v672
    %v674 = vadd.f32 %v670, %v673
    %vm675 = vweird.f32 %v514
    %vm676 = vweird.f32 %v670
    %vm677 = vmor %vm675, %vm676
    %v678 = vsel %vm677, %v670, %v674
    %v679 = vand.u32 2147483647, %v514
    %vm680 = vcmp.eq.f32.partialorder %v679, 8.507059e+37
    %v681 = vand.u32 %v514, 2147483648
    %v682 = vor.u32 1.1754944e-38, %v681
    %v683 = vsel %vm680, %v682, %v678
    %v684 = vmul.f32 1.0, %v683
    %v685 = vrcp.pop %v515
    %v686 = vmul.f32 %v515, %v685
    %v687 = vsub.f32 1.0, %v686
    %v688 = vmul.f32 %v685, %v687
    %v689 = vadd.f32 %v685, %v688
    %vm690 = vweird.f32 %v515
    %vm691 = vweird.f32 %v685
    %vm692 = vmor %vm690, %vm691
    %v693 = vsel %vm692, %v685, %v689
    %v694 = vand.u32 2147483647, %v515
    %vm695 = vcmp.eq.f32.partialorder %v694, 8.507059e+37
    %v696 = vand.u32 %v515, 2147483648
    %v697 = vor.u32 1.1754944e-38, %v696
    %v698 = vsel %vm695, %v697, %v693
    %v699 = vmul.f32 1.0, %v698
    %v700 = vrcp.pop %v516
    %v701 = vmul.f32 %v516, %v700
    %v702 = vsub.f32 1.0, %v701
    %v703 = vmul.f32 %v700, %v702
    %v704 = vadd.f32 %v700, %v703
    %vm705 = vweird.f32 %v516
    %vm706 = vweird.f32 %v700
    %vm707 = vmor %vm705, %vm706
    %v708 = vsel %vm707, %v700, %v704
    %v709 = vand.u32 2147483647, %v516
    %vm710 = vcmp.eq.f32.partialorder %v709, 8.507059e+37
    %v711 = vand.u32 %v516, 2147483648
    %v712 = vor.u32 1.1754944e-38, %v711
    %v713 = vsel %vm710, %v712, %v708
    %v714 = vmul.f32 1.0, %v713
    %v715 = vrcp.pop %v517
    %v716 = vmul.f32 %v517, %v715
    %v717 = vsub.f32 1.0, %v716
    %v718 = vmul.f32 %v715, %v717
    %v719 = vadd.f32 %v715, %v718
    %vm720 = vweird.f32 %v517
    %vm721 = vweird.f32 %v715
    %vm722 = vmor %vm720, %vm721
    %v723 = vsel %vm722, %v715, %v719
    %v724 = vand.u32 2147483647, %v517
    %vm725 = vcmp.eq.f32.partialorder %v724, 8.507059e+37
    %v726 = vand.u32 %v517, 2147483648
    %v727 = vor.u32 1.1754944e-38, %v726
    %v728 = vsel %vm725, %v727, %v723
    %v729 = vmul.f32 1.0, %v728
    %v730 = vrcp.pop %v518
    %v731 = vmul.f32 %v518, %v730
    %v732 = vsub.f32 1.0, %v731
    %v733 = vmul.f32 %v730, %v732
    %v734 = vadd.f32 %v730, %v733
    %vm735 = vweird.f32 %v518
    %vm736 = vweird.f32 %v730
    %vm737 = vmor %vm735, %vm736
    %v738 = vsel %vm737, %v730, %v734
    %v739 = vand.u32 2147483647, %v518
    %vm740 = vcmp.eq.f32.partialorder %v739, 8.507059e+37
    %v741 = vand.u32 %v518, 2147483648
    %v742 = vor.u32 1.1754944e-38, %v741
    %v743 = vsel %vm740, %v742, %v738
    %v744 = vmul.f32 1.0, %v743
    %v745 = vrcp.pop %v519
    %v746 = vmul.f32 %v519, %v745
    %v747 = vsub.f32 1.0, %v746
    %v748 = vmul.f32 %v745, %v747
    %v749 = vadd.f32 %v745, %v748
    %vm750 = vweird.f32 %v519
    %vm751 = vweird.f32 %v745
    %vm752 = vmor %vm750, %vm751
    %v753 = vsel %vm752, %v745, %v749
    %v754 = vand.u32 2147483647, %v519
    %vm755 = vcmp.eq.f32.partialorder %v754, 8.507059e+37
    %v756 = vand.u32 %v519, 2147483648
    %v757 = vor.u32 1.1754944e-38, %v756
    %v758 = vsel %vm755, %v757, %v753
    %v759 = vmul.f32 1.0, %v758
    %v761 = vperm.slane %v70, 0
    %v763 = vmul.f32 %v534, %v761
    %v764 = vmul.f32 %v549, %v761
    %v765 = vmul.f32 %v564, %v761
    %v766 = vmul.f32 %v579, %v761
    %v767 = vmul.f32 %v594, %v761
    %v768 = vmul.f32 %v609, %v761
    %v769 = vmul.f32 %v624, %v761
    %v770 = vmul.f32 %v639, %v761
    %v771 = vmul.f32 %v654, %v761
    %v772 = vmul.f32 %v669, %v761
    %v773 = vmul.f32 %v684, %v761
    %v774 = vmul.f32 %v699, %v761
    %v775 = vmul.f32 %v714, %v761
    %v776 = vmul.f32 %v729, %v761
    %v777 = vmul.f32 %v744, %v761
    %v778 = vmul.f32 %v759, %v761
    %v779 = vsel %vm74, %v763, 0.0
    %780 = vadd.xlane.f32.xlu0 %v779
    %v781 = vpop.xlane.xlu0 %780
    %v782 = vsel %vm74, %v764, 0.0
    %783 = vadd.xlane.f32.xlu0 %v782
    %v784 = vpop.xlane.xlu0 %783
    %v785 = vsel %vm74, %v765, 0.0
    %786 = vadd.xlane.f32.xlu0 %v785
    %v787 = vpop.xlane.xlu0 %786
    %v788 = vsel %vm74, %v766, 0.0
    %789 = vadd.xlane.f32.xlu0 %v788
    %v790 = vpop.xlane.xlu0 %789
    %v791 = vsel %vm74, %v767, 0.0
    %792 = vadd.xlane.f32.xlu0 %v791
    %v793 = vpop.xlane.xlu0 %792
    %v794 = vsel %vm74, %v768, 0.0
    %795 = vadd.xlane.f32.xlu0 %v794
    %v796 = vpop.xlane.xlu0 %795
    %v797 = vsel %vm74, %v769, 0.0
    %798 = vadd.xlane.f32.xlu0 %v797
    %v799 = vpop.xlane.xlu0 %798
    %v800 = vsel %vm74, %v770, 0.0
    %801 = vadd.xlane.f32.xlu0 %v800
    %v802 = vpop.xlane.xlu0 %801
    %v803 = vsel %vm74, %v771, 0.0
    %804 = vadd.xlane.f32.xlu0 %v803
    %v805 = vpop.xlane.xlu0 %804
    %v806 = vsel %vm74, %v772, 0.0
    %807 = vadd.xlane.f32.xlu0 %v806
    %v808 = vpop.xlane.xlu0 %807
    %v809 = vsel %vm74, %v773, 0.0
    %810 = vadd.xlane.f32.xlu0 %v809
    %v811 = vpop.xlane.xlu0 %810
    %v812 = vsel %vm74, %v774, 0.0
    %813 = vadd.xlane.f32.xlu0 %v812
    %v814 = vpop.xlane.xlu0 %813
    %v815 = vsel %vm74, %v775, 0.0
    %816 = vadd.xlane.f32.xlu0 %v815
    %v817 = vpop.xlane.xlu0 %816
    %v818 = vsel %vm74, %v776, 0.0
    %819 = vadd.xlane.f32.xlu0 %v818
    %v820 = vpop.xlane.xlu0 %819
    %v821 = vsel %vm74, %v777, 0.0
    %822 = vadd.xlane.f32.xlu0 %v821
    %v823 = vpop.xlane.xlu0 %822
    %v824 = vsel %vm74, %v778, 0.0
    %825 = vadd.xlane.f32.xlu0 %v824
    %v826 = vpop.xlane.xlu0 %825
    %v827 = vlaneseq
    %v828 = vand.u32 %v827, 127
    %829 = vset.pattern.permute.xlu0 0
    %830 = vperm.xlu0 %829, %v64
    %v831 = vpop.permute.xlu0 %830
    %832 = vset.pattern.permute.xlu0 0
    %833 = vperm.xlu0 %832, %v65
    %v834 = vpop.permute.xlu0 %833
    %vm835 = vcmp.ge.s32.totalorder %v828, %v831
    %vm836 = vcmp.ge.s32.totalorder %v828, %v834
    %v853 = vperm.slane %v781, %v828
    %v854 = vperm.slane %v784, %v828
    %v855 = vperm.slane %v787, %v828
    %v856 = vperm.slane %v790, %v828
    %v857 = vperm.slane %v793, %v828
    %v858 = vperm.slane %v796, %v828
    %v859 = vperm.slane %v799, %v828
    %v860 = vperm.slane %v802, %v828
    %v861 = vperm.slane %v805, %v828
    %v862 = vperm.slane %v808, %v828
    %v863 = vperm.slane %v811, %v828
    %v864 = vperm.slane %v814, %v828
    %v865 = vperm.slane %v817, %v828
    %v866 = vperm.slane %v820, %v828
    %v867 = vperm.slane %v823, %v828
    %v868 = vperm.slane %v826, %v828
    %vm869 = vcmask 1041409
    %v870 = vsel %vm869, %v854, %v853
    %vm871 = vcmask 1042434
    %v872 = vsel %vm871, %v855, %v870
    %vm873 = vcmask 1043459
    %v874 = vsel %vm873, %v856, %v872
    %vm875 = vcmask 1044484
    %v876 = vsel %vm875, %v857, %v874
    %vm877 = vcmask 1045509
    %v878 = vsel %vm877, %v858, %v876
    %vm879 = vcmask 1046534
    %v880 = vsel %vm879, %v859, %v878
    %vm881 = vcmask 1047559
    %v882 = vsel %vm881, %v860, %v880
    %v883 = vsel %vm869, %v862, %v861
    %v884 = vsel %vm871, %v863, %v883
    %v885 = vsel %vm873, %v864, %v884
    %v886 = vsel %vm875, %v865, %v885
    %v887 = vsel %vm877, %v866, %v886
    %v888 = vsel %vm879, %v867, %v887
    %v889 = vsel %vm881, %v868, %v888
    %v892 = vsel %vm835, -1e+30, %v882
    %v893 = vsel %vm836, -1e+30, %v889
    %v894 = vsel %vm74, %v892, -inf
    %895 = vmax.xlane.f32.xlu0 %v894
    %v896 = vpop.xlane.xlu0 %895
    %v897 = vsel %vm74, %v893, -inf
    %898 = vmax.xlane.f32.xlu0 %v897
    %v899 = vpop.xlane.xlu0 %898
    %v900 = vsub.f32 %v892, %v896
    %v901 = vsub.f32 %v893, %v899
    %v902 = vmul.f32 %v900, 1.442695
    %v903 = vpow.pop %v902
    %v904 = vmul.f32 %v901, 1.442695
    %v905 = vpow.pop %v904
    %v906 = vsel %vm74, %v903, 0.0
    %907 = vadd.xlane.f32.xlu0 %v906
    %v908 = vpop.xlane.xlu0 %907
    %v909 = vsel %vm74, %v905, 0.0
    %910 = vadd.xlane.f32.xlu0 %v909
    %v911 = vpop.xlane.xlu0 %910
    %v912 = vrcp.pop %v908
    %v913 = vmul.f32 %v908, %v912
    %v914 = vsub.f32 1.0, %v913
    %v915 = vmul.f32 %v912, %v914
    %v916 = vadd.f32 %v912, %v915
    %vm917 = vweird.f32 %v908
    %vm918 = vweird.f32 %v912
    %vm919 = vmor %vm917, %vm918
    %v920 = vsel %vm919, %v912, %v916
    %v921 = vand.u32 2147483647, %v908
    %vm922 = vcmp.eq.f32.partialorder %v921, 8.507059e+37
    %v923 = vand.u32 %v908, 2147483648
    %v924 = vor.u32 1.1754944e-38, %v923
    %v925 = vsel %vm922, %v924, %v920
    %v926 = vmul.f32 %v903, %v925
    %v927 = vrcp.pop %v911
    %v928 = vmul.f32 %v911, %v927
    %v929 = vsub.f32 1.0, %v928
    %v930 = vmul.f32 %v927, %v929
    %v931 = vadd.f32 %v927, %v930
    %vm932 = vweird.f32 %v911
    %vm933 = vweird.f32 %v927
    %vm934 = vmor %vm932, %vm933
    %v935 = vsel %vm934, %v927, %v931
    %v936 = vand.u32 2147483647, %v911
    %vm937 = vcmp.eq.f32.partialorder %v936, 8.507059e+37
    %v938 = vand.u32 %v911, 2147483648
    %v939 = vor.u32 1.1754944e-38, %v938
    %v940 = vsel %vm937, %v939, %v935
    %v941 = vmul.f32 %v905, %v940
    %v942 = vperm.slane %v926, 0
    %v943 = vlaneseq
    %v944 = vshrl.u32 %v943, 7
    %946 = vset.pattern.permute.xlu0 %v944
    %947 = vperm.xlu0 %946, %v942
    %v948 = vpop.permute.xlu0 %947
    %v949 = vperm.slane %v926, 1
    %v950 = vlaneseq
    %v951 = vshrl.u32 %v950, 7
    %953 = vset.pattern.permute.xlu0 %v951
    %954 = vperm.xlu0 %953, %v949
    %v955 = vpop.permute.xlu0 %954
    %v956 = vperm.slane %v926, 2
    %v957 = vlaneseq
    %v958 = vshrl.u32 %v957, 7
    %960 = vset.pattern.permute.xlu0 %v958
    %961 = vperm.xlu0 %960, %v956
    %v962 = vpop.permute.xlu0 %961
    %v963 = vperm.slane %v926, 3
    %v964 = vlaneseq
    %v965 = vshrl.u32 %v964, 7
    %967 = vset.pattern.permute.xlu0 %v965
    %968 = vperm.xlu0 %967, %v963
    %v969 = vpop.permute.xlu0 %968
    %v970 = vperm.slane %v926, 4
    %v971 = vlaneseq
    %v972 = vshrl.u32 %v971, 7
    %974 = vset.pattern.permute.xlu0 %v972
    %975 = vperm.xlu0 %974, %v970
    %v976 = vpop.permute.xlu0 %975
    %v977 = vperm.slane %v926, 5
    %v978 = vlaneseq
    %v979 = vshrl.u32 %v978, 7
    %981 = vset.pattern.permute.xlu0 %v979
    %982 = vperm.xlu0 %981, %v977
    %v983 = vpop.permute.xlu0 %982
    %v984 = vperm.slane %v926, 6
    %v985 = vlaneseq
    %v986 = vshrl.u32 %v985, 7
    %988 = vset.pattern.permute.xlu0 %v986
    %989 = vperm.xlu0 %988, %v984
    %v990 = vpop.permute.xlu0 %989
    %v991 = vperm.slane %v926, 7
    %v992 = vlaneseq
    %v993 = vshrl.u32 %v992, 7
    %995 = vset.pattern.permute.xlu0 %v993
    %996 = vperm.xlu0 %995, %v991
    %v997 = vpop.permute.xlu0 %996
    %v998 = vperm.slane %v941, 0
    %v999 = vlaneseq
    %v1000 = vshrl.u32 %v999, 7
    %1002 = vset.pattern.permute.xlu0 %v1000
    %1003 = vperm.xlu0 %1002, %v998
    %v1004 = vpop.permute.xlu0 %1003
    %v1005 = vperm.slane %v941, 1
    %v1006 = vlaneseq
    %v1007 = vshrl.u32 %v1006, 7
    %1009 = vset.pattern.permute.xlu0 %v1007
    %1010 = vperm.xlu0 %1009, %v1005
    %v1011 = vpop.permute.xlu0 %1010
    %v1012 = vperm.slane %v941, 2
    %v1013 = vlaneseq
    %v1014 = vshrl.u32 %v1013, 7
    %1016 = vset.pattern.permute.xlu0 %v1014
    %1017 = vperm.xlu0 %1016, %v1012
    %v1018 = vpop.permute.xlu0 %1017
    %v1019 = vperm.slane %v941, 3
    %v1020 = vlaneseq
    %v1021 = vshrl.u32 %v1020, 7
    %1023 = vset.pattern.permute.xlu0 %v1021
    %1024 = vperm.xlu0 %1023, %v1019
    %v1025 = vpop.permute.xlu0 %1024
    %v1026 = vperm.slane %v941, 4
    %v1027 = vlaneseq
    %v1028 = vshrl.u32 %v1027, 7
    %1030 = vset.pattern.permute.xlu0 %v1028
    %1031 = vperm.xlu0 %1030, %v1026
    %v1032 = vpop.permute.xlu0 %1031
    %v1033 = vperm.slane %v941, 5
    %v1034 = vlaneseq
    %v1035 = vshrl.u32 %v1034, 7
    %1037 = vset.pattern.permute.xlu0 %v1035
    %1038 = vperm.xlu0 %1037, %v1033
    %v1039 = vpop.permute.xlu0 %1038
    %v1040 = vperm.slane %v941, 6
    %v1041 = vlaneseq
    %v1042 = vshrl.u32 %v1041, 7
    %1044 = vset.pattern.permute.xlu0 %v1042
    %1045 = vperm.xlu0 %1044, %v1040
    %v1046 = vpop.permute.xlu0 %1045
    %v1047 = vperm.slane %v941, 7
    %v1048 = vlaneseq
    %v1049 = vshrl.u32 %v1048, 7
    %1051 = vset.pattern.permute.xlu0 %v1049
    %1052 = vperm.xlu0 %1051, %v1047
    %v1053 = vpop.permute.xlu0 %1052
    %v1054 = vmul.f32 %v948, %v46
    %v1055 = vmul.f32 %v955, %v47
    %v1056 = vmul.f32 %v962, %v48
    %v1057 = vmul.f32 %v969, %v49
    %v1058 = vmul.f32 %v976, %v50
    %v1059 = vmul.f32 %v983, %v51
    %v1060 = vmul.f32 %v990, %v52
    %v1061 = vmul.f32 %v997, %v53
    %v1062 = vmul.f32 %v1004, %v54
    %v1063 = vmul.f32 %v1011, %v55
    %v1064 = vmul.f32 %v1018, %v56
    %v1065 = vmul.f32 %v1025, %v57
    %v1066 = vmul.f32 %v1032, %v58
    %v1067 = vmul.f32 %v1039, %v59
    %v1068 = vmul.f32 %v1046, %v60
    %v1069 = vmul.f32 %v1053, %v61
    %v1070 = vsel %vm74, %v1054, 0.0
    %v1071 = vrot.slane %v1070, 4
    %v1072 = vadd.f32 %v1070, %v1071
    %v1073 = vrot.slane %v1072, 2
    %v1074 = vadd.f32 %v1072, %v1073
    %v1075 = vrot.slane %v1074, 1
    %v1076 = vadd.f32 %v1074, %v1075
    %v1077 = vsel %vm74, %v1055, 0.0
    %v1078 = vrot.slane %v1077, 4
    %v1079 = vadd.f32 %v1077, %v1078
    %v1080 = vrot.slane %v1079, 2
    %v1081 = vadd.f32 %v1079, %v1080
    %v1082 = vrot.slane %v1081, 1
    %v1083 = vadd.f32 %v1081, %v1082
    %v1084 = vsel %vm74, %v1056, 0.0
    %v1085 = vrot.slane %v1084, 4
    %v1086 = vadd.f32 %v1084, %v1085
    %v1087 = vrot.slane %v1086, 2
    %v1088 = vadd.f32 %v1086, %v1087
    %v1089 = vrot.slane %v1088, 1
    %v1090 = vadd.f32 %v1088, %v1089
    %v1091 = vsel %vm74, %v1057, 0.0
    %v1092 = vrot.slane %v1091, 4
    %v1093 = vadd.f32 %v1091, %v1092
    %v1094 = vrot.slane %v1093, 2
    %v1095 = vadd.f32 %v1093, %v1094
    %v1096 = vrot.slane %v1095, 1
    %v1097 = vadd.f32 %v1095, %v1096
    %v1098 = vsel %vm74, %v1058, 0.0
    %v1099 = vrot.slane %v1098, 4
    %v1100 = vadd.f32 %v1098, %v1099
    %v1101 = vrot.slane %v1100, 2
    %v1102 = vadd.f32 %v1100, %v1101
    %v1103 = vrot.slane %v1102, 1
    %v1104 = vadd.f32 %v1102, %v1103
    %v1105 = vsel %vm74, %v1059, 0.0
    %v1106 = vrot.slane %v1105, 4
    %v1107 = vadd.f32 %v1105, %v1106
    %v1108 = vrot.slane %v1107, 2
    %v1109 = vadd.f32 %v1107, %v1108
    %v1110 = vrot.slane %v1109, 1
    %v1111 = vadd.f32 %v1109, %v1110
    %v1112 = vsel %vm74, %v1060, 0.0
    %v1113 = vrot.slane %v1112, 4
    %v1114 = vadd.f32 %v1112, %v1113
    %v1115 = vrot.slane %v1114, 2
    %v1116 = vadd.f32 %v1114, %v1115
    %v1117 = vrot.slane %v1116, 1
    %v1118 = vadd.f32 %v1116, %v1117
    %v1119 = vsel %vm74, %v1061, 0.0
    %v1120 = vrot.slane %v1119, 4
    %v1121 = vadd.f32 %v1119, %v1120
    %v1122 = vrot.slane %v1121, 2
    %v1123 = vadd.f32 %v1121, %v1122
    %v1124 = vrot.slane %v1123, 1
    %v1125 = vadd.f32 %v1123, %v1124
    %v1126 = vsel %vm74, %v1062, 0.0
    %v1127 = vrot.slane %v1126, 4
    %v1128 = vadd.f32 %v1126, %v1127
    %v1129 = vrot.slane %v1128, 2
    %v1130 = vadd.f32 %v1128, %v1129
    %v1131 = vrot.slane %v1130, 1
    %v1132 = vadd.f32 %v1130, %v1131
    %v1133 = vsel %vm74, %v1063, 0.0
    %v1134 = vrot.slane %v1133, 4
    %v1135 = vadd.f32 %v1133, %v1134
    %v1136 = vrot.slane %v1135, 2
    %v1137 = vadd.f32 %v1135, %v1136
    %v1138 = vrot.slane %v1137, 1
    %v1139 = vadd.f32 %v1137, %v1138
    %v1140 = vsel %vm74, %v1064, 0.0
    %v1141 = vrot.slane %v1140, 4
    %v1142 = vadd.f32 %v1140, %v1141
    %v1143 = vrot.slane %v1142, 2
    %v1144 = vadd.f32 %v1142, %v1143
    %v1145 = vrot.slane %v1144, 1
    %v1146 = vadd.f32 %v1144, %v1145
    %v1147 = vsel %vm74, %v1065, 0.0
    %v1148 = vrot.slane %v1147, 4
    %v1149 = vadd.f32 %v1147, %v1148
    %v1150 = vrot.slane %v1149, 2
    %v1151 = vadd.f32 %v1149, %v1150
    %v1152 = vrot.slane %v1151, 1
    %v1153 = vadd.f32 %v1151, %v1152
    %v1154 = vsel %vm74, %v1066, 0.0
    %v1155 = vrot.slane %v1154, 4
    %v1156 = vadd.f32 %v1154, %v1155
    %v1157 = vrot.slane %v1156, 2
    %v1158 = vadd.f32 %v1156, %v1157
    %v1159 = vrot.slane %v1158, 1
    %v1160 = vadd.f32 %v1158, %v1159
    %v1161 = vsel %vm74, %v1067, 0.0
    %v1162 = vrot.slane %v1161, 4
    %v1163 = vadd.f32 %v1161, %v1162
    %v1164 = vrot.slane %v1163, 2
    %v1165 = vadd.f32 %v1163, %v1164
    %v1166 = vrot.slane %v1165, 1
    %v1167 = vadd.f32 %v1165, %v1166
    %v1168 = vsel %vm74, %v1068, 0.0
    %v1169 = vrot.slane %v1168, 4
    %v1170 = vadd.f32 %v1168, %v1169
    %v1171 = vrot.slane %v1170, 2
    %v1172 = vadd.f32 %v1170, %v1171
    %v1173 = vrot.slane %v1172, 1
    %v1174 = vadd.f32 %v1172, %v1173
    %v1175 = vsel %vm74, %v1069, 0.0
    %v1176 = vrot.slane %v1175, 4
    %v1177 = vadd.f32 %v1175, %v1176
    %v1178 = vrot.slane %v1177, 2
    %v1179 = vadd.f32 %v1177, %v1178
    %v1180 = vrot.slane %v1179, 1
    %v1181 = vadd.f32 %v1179, %v1180
    %v1198 = vsel %vm869, %v1083, %v1076
    %v1199 = vsel %vm871, %v1090, %v1198
    %v1200 = vsel %vm873, %v1097, %v1199
    %v1201 = vsel %vm875, %v1104, %v1200
    %v1202 = vsel %vm877, %v1111, %v1201
    %v1203 = vsel %vm879, %v1118, %v1202
    %v1204 = vsel %vm881, %v1125, %v1203
    %v1205 = vsel %vm869, %v1139, %v1132
    %v1206 = vsel %vm871, %v1146, %v1205
    %v1207 = vsel %vm873, %v1153, %v1206
    %v1208 = vsel %vm875, %v1160, %v1207
    %v1209 = vsel %vm877, %v1167, %v1208
    %v1210 = vsel %vm879, %v1174, %v1209
    %v1211 = vsel %vm881, %v1181, %v1210
    %1214 = vxpose.xlu0.b32.start [1/16] %v1204, 128
    %1215 = vxpose.xlu0.b32.cont [2/16] %v1211, 128
    %1216 = vxpose.xlu0.b32.cont [3/16] 0.0, 128
    %1217 = vxpose.xlu0.b32.cont [4/16] 0.0, 128
    %1218 = vxpose.xlu0.b32.cont [5/16] 0.0, 128
    %1219 = vxpose.xlu0.b32.cont [6/16] 0.0, 128
    %1220 = vxpose.xlu0.b32.cont [7/16] 0.0, 128
    %1221 = vxpose.xlu0.b32.cont [8/16] 0.0, 128
    %1222 = vxpose.xlu0.b32.cont [9/16] 0.0, 128
    %1223 = vxpose.xlu0.b32.cont [10/16] 0.0, 128
    %1224 = vxpose.xlu0.b32.cont [11/16] 0.0, 128
    %1225 = vxpose.xlu0.b32.cont [12/16] 0.0, 128
    %1226 = vxpose.xlu0.b32.cont [13/16] 0.0, 128
    %1227 = vxpose.xlu0.b32.cont [14/16] 0.0, 128
    %1228 = vxpose.xlu0.b32.cont [15/16] 0.0, 128
    %1229 = vxpose.xlu0.b32.end [16/16] 0.0, 128
    %v1230 = vpop.trf.xlu0
    %v1231 = vpop.trf.xlu0
    %v1232 = vpop.trf.xlu0
    %v1233 = vpop.trf.xlu0
    %v1234 = vpop.trf.xlu0
    %v1235 = vpop.trf.xlu0
    %v1236 = vpop.trf.xlu0
    %v1237 = vpop.trf.xlu0
    %v1238 = vpop.trf.xlu0
    %v1239 = vpop.trf.xlu0
    %v1240 = vpop.trf.xlu0
    %v1241 = vpop.trf.xlu0
    %v1242 = vpop.trf.xlu0
    %v1243 = vpop.trf.xlu0
    %v1244 = vpop.trf.xlu0
    %v1245 = vpop.trf.xlu0
    %vm1246 = vcmask 130048
    %1247 = vst.msk [vmem:[#allocation2] sm:$0xff] %vm1246, %v1230
    // Predicated region
    $region34: #{din_attention.1} parent=1 // pred_check
      _
    $region35: #{din_attention.1} parent=1 // pred_check_branch
      %1249 = sbr.rel (0) target = $region37
    $region36: #{din_attention.1} parent=1 // pred_region
      %1251 = vsyncadd [#allocation3], 0
      %s1253 = sshll.u32 [#allocation2], 4
      %s1254 = int_to_ptr.vmem [resolvable:$true] %s1253
      %s1255 = sshll.u32 %s8, 4
      %s1256 = int_to_ptr.hbm [resolvable:$true] %s1255
      %1258 = dma.vmem_to_hbm [thread:$0]  %s1254, 128, %s1256, [#allocation3]
    $region37: #{din_attention.1} parent=1 // pred_fallthru
      _
    // Predicated region
    $region38: #{din_attention.1} parent=1 // pred_check
      _
    $region39: #{din_attention.1} parent=1 // pred_check_branch
      %1260 = sbr.rel (0) target = $region41
    $region40: #{din_attention.1} parent=1 // pred_region
      %1262 = dma.done [#allocation3], 128
    $region41: #{din_attention.1} parent=1 // pred_fallthru
      _
    %1263 = vsyncpa [#allocation3], 1

</llo_original>
